<compile_context>
chip_gen: v5e
topology: v5e:2x2
jax: 0.10.0
libtpu: 0.0.40
codegen_flags: <defaults>
</compile_context>

<pallas_src>
import jax
import jax.numpy as jnp
import numpy as np
from jax.experimental import pallas as pl
from jax.experimental.pallas import tpu as pltpu


def cnn_classifier_kernel(patch_ref, wc_ref, wl_ref, out_ref):
    # patch_ref: (B*Lpad, KCp)  im2col patches + ones column, bf16
    # wc_ref:    (KCp, Fpad)    flattened conv weight + fused bias row, bf16
    # wl_ref:    (Fpad, 128)    linear weight (+ bias row at the spare feature), bf16
    # out_ref:   (B, 128)       logits, lane-dense (cols >=2 are zero), f32
    b_lpad = patch_ref.shape[0]
    f_pad = wc_ref.shape[1]
    batch = out_ref.shape[0]
    l_pad = b_lpad // batch

    # One im2col matmul on the MXU; conv bias already fused via the ones column.
    conv = jnp.dot(patch_ref[...], wc_ref[...],
                   preferred_element_type=jnp.float32)          # (B*Lpad, Fpad) f32
    conv = jnp.maximum(conv, 0.0)                               # ReLU (f32 VPU)

    # Global max-pool over time per sample. Lpad is a multiple of 8, so this
    # reshape is tile-aligned (free view) and the max is a clean sublane reduce.
    pooled = jnp.max(conv.reshape(batch, l_pad, f_pad), axis=1)  # (B, Fpad)

    # Batched linear: bf16 operands, f32 accumulation. The spare feature column
    # carries a constant 1.0, whose wl row holds the linear bias.
    logits = jnp.dot(pooled.astype(jnp.bfloat16), wl_ref[...],
                     preferred_element_type=jnp.float32)         # (B, 128)
    # TODO(synk): dropout applied as identity (eval mode); training-mode RNG mask not implemented.
    out_ref[...] = logits.astype(out_ref.dtype)


def cnn_classifier_forward(x_ncw, conv_w, conv_b, lin_w, lin_b):
    """Forward pass matching CNNClassifier.forward (eval mode).

    x_ncw : (B, C, L)  -- PyTorch Conv1d NCW input
    conv_w: (F, C, K)  -- nn.Conv1d weight
    conv_b: (F,)       -- nn.Conv1d bias
    lin_w : (2, F)     -- nn.Linear weight
    lin_b : (2,)       -- nn.Linear bias
    returns (B, 2) logits
    """
    B, C, L = x_ncw.shape
    Fn, _, K = conv_w.shape
    n_out = lin_w.shape[0]
    Lout = L - K + 1
    Lpad = ((Lout + 7) // 8) * 8                 # tile-aligned rows per sample
    KC = K * C
    KCp = ((KC + 1 + 127) // 128) * 128          # +1 for the fused-bias ones column
    Fp = ((Fn + 1 + 127) // 128) * 128           # +1 spare feature column for linear bias
    Np = 128                                     # lane-dense output width
    ones_col = KC                                # ones column index in patches
    bias_feat = Fn                               # spare conv-output feature (== 1 after ReLU/max)

    # --- layout prep in the wrapper (one XLA fusion, one HBM pass) -----------
    x_blc = jnp.transpose(x_ncw, (0, 2, 1)).astype(jnp.float32)          # (B, L, C)
    # im2col: patches[b, l, k*C + c] = x[b, c, l+k]
    patches = jnp.stack([x_blc[:, k:k + Lout, :] for k in range(K)], axis=2)
    patches = patches.reshape(B, Lout, KC)
    # Pad Lout -> Lpad by replicating the last valid patch row (max-pool safe).
    pad_rows = jnp.broadcast_to(patches[:, Lout - 1:Lout, :], (B, Lpad - Lout, KC))
    patches = jnp.concatenate([patches, pad_rows], axis=1)               # (B, Lpad, KC)
    # Append the ones column (fused conv bias) and zero-pad the lane dim.
    patches = jnp.concatenate(
        [patches, jnp.ones((B, Lpad, 1), jnp.float32)], axis=2)
    patches = jnp.pad(patches, ((0, 0), (0, 0), (0, KCp - KC - 1)))
    patches = patches.reshape(B * Lpad, KCp).astype(jnp.bfloat16)

    # conv weight -> (KC, Fp); row `ones_col` carries [conv_b | 1.0 at bias_feat | 0].
    wc = jnp.transpose(conv_w, (2, 1, 0)).reshape(KC, Fn)
    wc = jnp.pad(wc, ((0, 0), (0, Fp - Fn)))
    bias_row = jnp.pad(conv_b.astype(jnp.float32), (0, Fp - Fn))
    bias_row = bias_row.at[bias_feat].set(1.0)
    wc_plus = jnp.concatenate(
        [wc, bias_row[None, :], jnp.zeros((KCp - KC - 1, Fp), jnp.float32)],
        axis=0).astype(jnp.bfloat16)                                     # (KCp, Fp)

    # linear weight -> (Fp, 128); padded feature rows are zero so they drop out,
    # and the spare-feature row carries the linear bias (pooled there == 1.0).
    wl_plus = jnp.zeros((Fp, Np), jnp.float32)
    wl_plus = wl_plus.at[:Fn, :n_out].set(jnp.transpose(lin_w, (1, 0)))
    wl_plus = wl_plus.at[bias_feat, :n_out].set(lin_b)
    wl_plus = wl_plus.astype(jnp.bfloat16)                               # (Fp, 128)

    vmem = pl.BlockSpec(memory_space=pltpu.MemorySpace.VMEM)
    out = pl.pallas_call(
        cnn_classifier_kernel,
        out_shape=jax.ShapeDtypeStruct((B, Np), jnp.float32),
        in_specs=[vmem, vmem, vmem],
        out_specs=vmem,
    )(patches, wc_plus, wl_plus)
    return out[:, :n_out]                                                # (B, 2)


def _reference_forward(x_ncw, conv_w, conv_b, lin_w, lin_b):
    """Plain-JAX f32 reference mirroring the PyTorch module (eval mode)."""
    B, C, L = x_ncw.shape
    Fn, _, K = conv_w.shape
    Lout = L - K + 1
    out = jnp.zeros((B, Fn, Lout), jnp.float32)
    for k in range(K):
        out = out + jnp.einsum('bcl,fc->bfl',
                               x_ncw[:, :, k:k + Lout], conv_w[:, :, k])
    out = out + conv_b[None, :, None]
    out = jnp.maximum(out, 0.0)
    pooled = jnp.max(out, axis=2)             # (B, F) == max_pool1d + squeeze
    return pooled @ lin_w.T + lin_b[None, :]  # (B, 2)


if __name__ == "__main__":
    # Small shapes consistent with the module: Conv1d(embed_size -> num_filter)
    B = 2            # batch
    embed_size = 32  # Conv1d in_channels
    seq_len = 16     # sequence length (W in NCW)
    kernel_size = 5
    num_filter = 64

    key = jax.random.PRNGKey(0)
    k_x, k_wc, k_bc, k_wl, k_bl = jax.random.split(key, 5)

    # Input: PyTorch Conv1d takes NCW
    x = jax.random.normal(k_x, (B, embed_size, seq_len), dtype=jnp.float32)

    # Deterministic parameter init (xavier_normal_ for weights, PyTorch default
    # uniform bounds for biases).
    fan_in_c, fan_out_c = embed_size * kernel_size, num_filter * kernel_size
    std_c = float(np.sqrt(2.0 / (fan_in_c + fan_out_c)))
    conv_w = std_c * jax.random.normal(
        k_wc, (num_filter, embed_size, kernel_size), dtype=jnp.float32)
    bound_c = 1.0 / float(np.sqrt(embed_size * kernel_size))
    conv_b = jax.random.uniform(
        k_bc, (num_filter,), minval=-bound_c, maxval=bound_c, dtype=jnp.float32)

    std_l = float(np.sqrt(2.0 / (num_filter + 2)))
    lin_w = std_l * jax.random.normal(k_wl, (2, num_filter), dtype=jnp.float32)
    bound_l = 1.0 / float(np.sqrt(num_filter))
    lin_b = jax.random.uniform(
        k_bl, (2,), minval=-bound_l, maxval=bound_l, dtype=jnp.float32)

    out = cnn_classifier_forward(x, conv_w, conv_b, lin_w, lin_b)
    out = jax.block_until_ready(out)

    ref = _reference_forward(x, conv_w, conv_b, lin_w, lin_b)
    # Loosened vs f32 (bf16 MXU operands/biases, f32 accumulation bounds the error).
    np.testing.assert_allclose(np.asarray(out), np.asarray(ref),
                               rtol=2e-2, atol=2e-2)

    print("KERNEL_OK")
</pallas_src>

<mosaic_0001>
module attributes {stable_mosaic.version = 11 : i64} {
  func.func @cnn_classifier_kernel(%arg0: memref<32x256xbf16, #tpu.memory_space<vmem>>, %arg1: memref<256x128xbf16, #tpu.memory_space<vmem>>, %arg2: memref<128x128xbf16, #tpu.memory_space<vmem>>, %arg3: memref<2x128xf32, #tpu.memory_space<vmem>>) attributes {dimension_semantics = [], scalar_prefetch = 0 : i64, scratch_operands = 0 : i64, tpu.core_type = #tpu.core_type<tc>} {
    %c0 = arith.constant 0 : index
    %c0_0 = arith.constant 0 : index
    %0 = vector.load %arg0[%c0, %c0_0] : memref<32x256xbf16, #tpu.memory_space<vmem>>, vector<32x256xbf16>
    %c0_1 = arith.constant 0 : index
    %c0_2 = arith.constant 0 : index
    %1 = vector.load %arg1[%c0_1, %c0_2] : memref<256x128xbf16, #tpu.memory_space<vmem>>, vector<256x128xbf16>
    %cst = arith.constant dense<0.000000e+00> : vector<32x128xf32>
    %2 = tpu.matmul %0, %1, %cst {dimension_numbers = #tpu.dot_dimension_numbers<[1], [0], [0], [1], [0, 0, 1, 1], [], []>} : vector<32x256xbf16>, vector<256x128xbf16>, vector<32x128xf32> -> vector<32x128xf32>
    %cst_3 = arith.constant 0.000000e+00 : f32
    %3 = vector.broadcast %cst_3 : f32 to vector<32x128xf32>
    %4 = arith.maximumf %2, %3 : vector<32x128xf32>
    %5 = vector.shape_cast %4 : vector<32x128xf32> to vector<2x16x128xf32>
    %cst_4 = arith.constant dense<0xFF800000> : vector<2x128xf32>
    %6 = vector.multi_reduction <maximumf>, %5, %cst_4 [1] : vector<2x16x128xf32> to vector<2x128xf32>
    %7 = arith.truncf %6 : vector<2x128xf32> to vector<2x128xbf16>
    %c0_5 = arith.constant 0 : index
    %c0_6 = arith.constant 0 : index
    %8 = vector.load %arg2[%c0_5, %c0_6] : memref<128x128xbf16, #tpu.memory_space<vmem>>, vector<128x128xbf16>
    %cst_7 = arith.constant dense<0.000000e+00> : vector<2x128xf32>
    %9 = tpu.matmul %7, %8, %cst_7 {dimension_numbers = #tpu.dot_dimension_numbers<[1], [0], [0], [1], [0, 0, 1, 1], [], []>} : vector<2x128xbf16>, vector<128x128xbf16>, vector<2x128xf32> -> vector<2x128xf32>
    %c0_8 = arith.constant 0 : index
    %c0_9 = arith.constant 0 : index
    %10 = vector.load %arg3[%c0_8, %c0_9] : memref<2x128xf32, #tpu.memory_space<vmem>>, vector<2x128xf32>
    tpu.vector_store %arg3[%c0_8, %c0_9], %9 {strides = array<i32>} : memref<2x128xf32, #tpu.memory_space<vmem>>, vector<2x128xf32>,
    return
  }
}

</mosaic_0001>

<llo_original>
// kernel: tpu_custom_call.1
$region0: #{tpu_custom_call.1}
  #allocation0 [shape = 'u32[]', space=smem, size = 0x4, offset = 0x4, fixed_abs, tag = 'smem constant byte address 0x4 - core index']
  #allocation1 [shape = 'u32[72,128]{1,0:T(1,128)}', space=vmem, size = 0x9000, scoped, tag = 'internal scratch']
  %s0 = inlined_call_operand.hbm [shape: bf16[32,256], index: 0, kind: input, shape index: {}]
  %s1 = inlined_call_operand.hbm [shape: bf16[256,128], index: 1, kind: input, shape index: {}]
  %s2 = inlined_call_operand.hbm [shape: bf16[128,128], index: 2, kind: input, shape index: {}]
  %s3 = inlined_call_operand.hbm [shape: f32[2,128], index: 3, kind: output, shape index: {}]
  %s4 = sld [smem:[#allocation0]]
  $region34: #{tpu_custom_call.1} parent=0
    _
  %s6 = ssub.s32 1, %s4
  %s7 = scalar_select 0, %s6, %s4
  $region1: #{tpu_custom_call.1} parent=0
    #allocation2 [shape = 'u8[16384]{0}', space=vmem, size = 0x4000, scoped, tag = 'input window, operand 0, single buffered']
    #allocation3 [shape = 's32[1]{0}', space=sflag, size = 0x4, scoped, tag = 'scoped memory for tpu_custom_call.1']
    #allocation4 [shape = 's32[1]{0}', space=sflag, size = 0x4, scoped, tag = 'scoped memory for tpu_custom_call.1']
    #allocation5 [shape = 'u8[65536]{0}', space=vmem, size = 0x10000, scoped, tag = 'input window, operand 1, single buffered']
    #allocation6 [shape = 's32[1]{0}', space=sflag, size = 0x4, scoped, tag = 'scoped memory for tpu_custom_call.1']
    #allocation7 [shape = 'u8[32768]{0}', space=vmem, size = 0x8000, scoped, tag = 'input window, operand 2, single buffered']
    #allocation8 [shape = 'u8[1024]{0}', space=vmem, size = 0x400, scoped, tag = 'output window, operand 0, single buffered']
    %8 = vsyncpa [#allocation3], 0
    %9 = vsyncpa [#allocation6], 0
    %10 = vsyncpa [#allocation4], 0
    // Predicated region
    $region2: #{tpu_custom_call.1} parent=1 // pred_check
      _
    $region3: #{tpu_custom_call.1} parent=1 // pred_check_branch
      %12 = sbr.rel (0) target = $region5
    $region4: #{tpu_custom_call.1} parent=1 // pred_region
      %14 = vsyncadd [#allocation3], 0
      %s15 = sshll.u32 %s0, 4
      %s16 = int_to_ptr.hbm [resolvable:$true] %s15
      %s17 = sshll.u32 [#allocation2], 4
      %s18 = int_to_ptr.vmem [resolvable:$true] %s17
      %23 = dma.hbm_to_vmem [thread:$0]  %s16, 512, %s18, [#allocation3], 128, 128, 8
    $region5: #{tpu_custom_call.1} parent=1 // pred_fallthru
      _
    // Predicated region
    $region6: #{tpu_custom_call.1} parent=1 // pred_check
      _
    $region7: #{tpu_custom_call.1} parent=1 // pred_check_branch
      %25 = sbr.rel (0) target = $region9
    $region8: #{tpu_custom_call.1} parent=1 // pred_region
      %27 = vsyncadd [#allocation6], 0
      %s28 = sshll.u32 %s1, 4
      %s29 = int_to_ptr.hbm [resolvable:$true] %s28
      %s30 = sshll.u32 [#allocation5], 4
      %s31 = int_to_ptr.vmem [resolvable:$true] %s30
      %36 = dma.hbm_to_vmem [thread:$0]  %s29, 2048, %s31, [#allocation6], 64, 64, 4
    $region9: #{tpu_custom_call.1} parent=1 // pred_fallthru
      _
    // Predicated region
    $region10: #{tpu_custom_call.1} parent=1 // pred_check
      _
    $region11: #{tpu_custom_call.1} parent=1 // pred_check_branch
      %38 = sbr.rel (0) target = $region13
    $region12: #{tpu_custom_call.1} parent=1 // pred_region
      %40 = vsyncadd [#allocation6], 0
      %s41 = sshll.u32 %s2, 4
      %s42 = int_to_ptr.hbm [resolvable:$true] %s41
      %s43 = sshll.u32 [#allocation7], 4
      %s44 = int_to_ptr.vmem [resolvable:$true] %s43
      %49 = dma.hbm_to_vmem [thread:$0]  %s42, 1024, %s44, [#allocation6], 64, 64, 4
    $region13: #{tpu_custom_call.1} parent=1 // pred_fallthru
      _
    // Predicated region
    $region14: #{tpu_custom_call.1} parent=1 // pred_check
      _
    $region15: #{tpu_custom_call.1} parent=1 // pred_check_branch
      %51 = sbr.rel (0) target = $region17
    $region16: #{tpu_custom_call.1} parent=1 // pred_region
      %53 = dma.done [#allocation3], 512
    $region17: #{tpu_custom_call.1} parent=1 // pred_fallthru
      _
    // Predicated region
    $region18: #{tpu_custom_call.1} parent=1 // pred_check
      _
    $region19: #{tpu_custom_call.1} parent=1 // pred_check_branch
      %55 = sbr.rel (0) target = $region21
    $region20: #{tpu_custom_call.1} parent=1 // pred_region
      %57 = dma.done [#allocation6], 2048
    $region21: #{tpu_custom_call.1} parent=1 // pred_fallthru
      _
    // Predicated region
    $region22: #{tpu_custom_call.1} parent=1 // pred_check
      _
    $region23: #{tpu_custom_call.1} parent=1 // pred_check_branch
      %59 = sbr.rel (0) target = $region25
    $region24: #{tpu_custom_call.1} parent=1 // pred_region
      %61 = dma.done [#allocation6], 1024
    $region25: #{tpu_custom_call.1} parent=1 // pred_fallthru
      _
    %v62 = vld [vmem:[#allocation2] sm:$0xff]
    %v63 = vld [vmem:[#allocation2 + $0x8] sm:$0xff]
    %v64 = vld [vmem:[#allocation2 + $0x10] sm:$0xff]
    %v65 = vld [vmem:[#allocation2 + $0x18] sm:$0xff]
    %v66 = vld [vmem:[#allocation5] sm:$0xf]
    %v67 = vld [vmem:[#allocation5 + $0x4] sm:$0xf]
    %v68 = vld [vmem:[#allocation5 + $0x8] sm:$0xf]
    %v69 = vld [vmem:[#allocation5 + $0xc] sm:$0xf]
    %v70 = vld [vmem:[#allocation5 + $0x10] sm:$0xf]
    %v71 = vld [vmem:[#allocation5 + $0x14] sm:$0xf]
    %v72 = vld [vmem:[#allocation5 + $0x18] sm:$0xf]
    %v73 = vld [vmem:[#allocation5 + $0x1c] sm:$0xf]
    %v74 = vld [vmem:[#allocation5 + $0x20] sm:$0xf]
    %v75 = vld [vmem:[#allocation5 + $0x24] sm:$0xf]
    %v76 = vld [vmem:[#allocation5 + $0x28] sm:$0xf]
    %v77 = vld [vmem:[#allocation5 + $0x2c] sm:$0xf]
    %v78 = vld [vmem:[#allocation5 + $0x30] sm:$0xf]
    %v79 = vld [vmem:[#allocation5 + $0x34] sm:$0xf]
    %v80 = vld [vmem:[#allocation5 + $0x38] sm:$0xf]
    %v81 = vld [vmem:[#allocation5 + $0x3c] sm:$0xf]
    %v82 = vld [vmem:[#allocation5 + $0x40] sm:$0xf]
    %v83 = vld [vmem:[#allocation5 + $0x44] sm:$0xf]
    %v84 = vld [vmem:[#allocation5 + $0x48] sm:$0xf]
    %v85 = vld [vmem:[#allocation5 + $0x4c] sm:$0xf]
    %v86 = vld [vmem:[#allocation5 + $0x50] sm:$0xf]
    %v87 = vld [vmem:[#allocation5 + $0x54] sm:$0xf]
    %v88 = vld [vmem:[#allocation5 + $0x58] sm:$0xf]
    %v89 = vld [vmem:[#allocation5 + $0x5c] sm:$0xf]
    %v90 = vld [vmem:[#allocation5 + $0x60] sm:$0xf]
    %v91 = vld [vmem:[#allocation5 + $0x64] sm:$0xf]
    %v92 = vld [vmem:[#allocation5 + $0x68] sm:$0xf]
    %v93 = vld [vmem:[#allocation5 + $0x6c] sm:$0xf]
    %v94 = vld [vmem:[#allocation5 + $0x70] sm:$0xf]
    %v95 = vld [vmem:[#allocation5 + $0x74] sm:$0xf]
    %v96 = vld [vmem:[#allocation5 + $0x78] sm:$0xf]
    %v97 = vld [vmem:[#allocation5 + $0x7c] sm:$0xf]
    %v102 = vunpack.c.l.b16 %v62
    %v103 = vunpack.c.h.b16 %v62
    %v104 = vunpack.c.l.b16 %v63
    %v105 = vunpack.c.h.b16 %v63
    %v106 = vunpack.c.l.b16 %v64
    %v107 = vunpack.c.h.b16 %v64
    %v108 = vunpack.c.l.b16 %v65
    %v109 = vunpack.c.h.b16 %v65
    %v110 = vpack.c.b16 %v104, %v102
    %v111 = vpack.c.b16 %v105, %v103
    %v112 = vpack.c.b16 %v108, %v106
    %v113 = vpack.c.b16 %v109, %v107
    %v150 = vunpack.c.l.b16 %v66
    %v151 = vunpack.c.l.b16 %v67
    %v152 = vunpack.c.l.b16 %v68
    %v153 = vunpack.c.l.b16 %v69
    %v154 = vunpack.c.l.b16 %v70
    %v155 = vunpack.c.l.b16 %v71
    %v156 = vunpack.c.l.b16 %v72
    %v157 = vunpack.c.l.b16 %v73
    %v158 = vunpack.c.l.b16 %v74
    %v159 = vunpack.c.l.b16 %v75
    %v160 = vunpack.c.l.b16 %v76
    %v161 = vunpack.c.l.b16 %v77
    %v162 = vunpack.c.l.b16 %v78
    %v163 = vunpack.c.l.b16 %v79
    %v164 = vunpack.c.l.b16 %v80
    %v165 = vunpack.c.l.b16 %v81
    %v166 = vunpack.c.l.b16 %v82
    %v167 = vunpack.c.l.b16 %v83
    %v168 = vunpack.c.l.b16 %v84
    %v169 = vunpack.c.l.b16 %v85
    %v170 = vunpack.c.l.b16 %v86
    %v171 = vunpack.c.l.b16 %v87
    %v172 = vunpack.c.l.b16 %v88
    %v173 = vunpack.c.l.b16 %v89
    %v174 = vunpack.c.l.b16 %v90
    %v175 = vunpack.c.l.b16 %v91
    %v176 = vunpack.c.l.b16 %v92
    %v177 = vunpack.c.l.b16 %v93
    %v178 = vunpack.c.l.b16 %v94
    %v179 = vunpack.c.l.b16 %v95
    %v180 = vunpack.c.l.b16 %v96
    %v181 = vunpack.c.l.b16 %v97
    %v182 = vpack.c.b16 %v151, %v150
    %v183 = vpack.c.b16 %v153, %v152
    %v184 = vpack.c.b16 %v155, %v154
    %v185 = vpack.c.b16 %v157, %v156
    %v186 = vpack.c.b16 %v159, %v158
    %v187 = vpack.c.b16 %v161, %v160
    %v188 = vpack.c.b16 %v163, %v162
    %v189 = vpack.c.b16 %v165, %v164
    %v190 = vpack.c.b16 %v167, %v166
    %v191 = vpack.c.b16 %v169, %v168
    %v192 = vpack.c.b16 %v171, %v170
    %v193 = vpack.c.b16 %v173, %v172
    %v194 = vpack.c.b16 %v175, %v174
    %v195 = vpack.c.b16 %v177, %v176
    %v196 = vpack.c.b16 %v179, %v178
    %v197 = vpack.c.b16 %v181, %v180
    %214 = vmatpush.bf16.msra.mxu0 %v189
    %215 = vmatpush.bf16.msra.mxu0 %v188
    %216 = vmatpush.bf16.msra.mxu0 %v187
    %217 = vmatpush.bf16.msra.mxu0 %v186
    %218 = vmatpush.bf16.msra.mxu0 %v185
    %219 = vmatpush.bf16.msra.mxu0 %v184
    %220 = vmatpush.bf16.msra.mxu0 %v183
    %221 = vmatpush.bf16.msra.mxu0 %v182
    %222 = vmatmul.bf16.gmra.mxu0 %v110
    %v223 = vpop.f32.mrf.mxu0
    %v224 = vadd.f32 0.0, %v223
    %v225 = vpop.f32.mrf.mxu0
    %v226 = vadd.f32 0.0, %v225
    %227 = vmatmul.bf16.gmra.mxu0 %v112
    %v228 = vpop.f32.mrf.mxu0
    %v229 = vadd.f32 0.0, %v228
    %v230 = vpop.f32.mrf.mxu0
    %v231 = vadd.f32 0.0, %v230
    %232 = vdwg.mxu0
    %233 = vmatpush.bf16.msra.mxu0 %v197
    %234 = vmatpush.bf16.msra.mxu0 %v196
    %235 = vmatpush.bf16.msra.mxu0 %v195
    %236 = vmatpush.bf16.msra.mxu0 %v194
    %237 = vmatpush.bf16.msra.mxu0 %v193
    %238 = vmatpush.bf16.msra.mxu0 %v192
    %239 = vmatpush.bf16.msra.mxu0 %v191
    %240 = vmatpush.bf16.msra.mxu0 %v190
    %241 = vmatmul.bf16.gmra.mxu0 %v111
    %v242 = vpop.f32.mrf.mxu0
    %v243 = vadd.f32 %v224, %v242
    %v244 = vpop.f32.mrf.mxu0
    %v245 = vadd.f32 %v226, %v244
    %246 = vmatmul.bf16.gmra.mxu0 %v113
    %v247 = vpop.f32.mrf.mxu0
    %v248 = vadd.f32 %v229, %v247
    %v249 = vpop.f32.mrf.mxu0
    %v250 = vadd.f32 %v231, %v249
    %251 = vdwg.mxu0
    %v252 = vmax.f32 %v243, 0.0
    %v253 = vmax.f32 %v245, 0.0
    %v254 = vmax.f32 %v248, 0.0
    %v255 = vmax.f32 %v250, 0.0
    %v256 = vmax.f32 %v252, %v253
    %v257 = vrot.slane %v256, 4
    %v258 = vmax.f32 %v256, %v257
    %v259 = vrot.slane %v258, 2
    %v260 = vmax.f32 %v258, %v259
    %v261 = vrot.slane %v260, 1
    %v262 = vmax.f32 %v260, %v261
    %v263 = vmax.f32 %v254, %v255
    %v264 = vrot.slane %v263, 4
    %v265 = vmax.f32 %v263, %v264
    %v266 = vrot.slane %v265, 2
    %v267 = vmax.f32 %v265, %v266
    %v268 = vrot.slane %v267, 1
    %v269 = vmax.f32 %v267, %v268
    %v270 = vpack.c.bf16 %v262, %v262
    %v271 = vpack.c.bf16 %v269, %v269
    %v272 = vld [vmem:[#allocation7] sm:$0xf]
    %v273 = vld [vmem:[#allocation7 + $0x4] sm:$0xf]
    %v274 = vld [vmem:[#allocation7 + $0x8] sm:$0xf]
    %v275 = vld [vmem:[#allocation7 + $0xc] sm:$0xf]
    %v276 = vld [vmem:[#allocation7 + $0x10] sm:$0xf]
    %v277 = vld [vmem:[#allocation7 + $0x14] sm:$0xf]
    %v278 = vld [vmem:[#allocation7 + $0x18] sm:$0xf]
    %v279 = vld [vmem:[#allocation7 + $0x1c] sm:$0xf]
    %v280 = vld [vmem:[#allocation7 + $0x20] sm:$0xf]
    %v281 = vld [vmem:[#allocation7 + $0x24] sm:$0xf]
    %v282 = vld [vmem:[#allocation7 + $0x28] sm:$0xf]
    %v283 = vld [vmem:[#allocation7 + $0x2c] sm:$0xf]
    %v284 = vld [vmem:[#allocation7 + $0x30] sm:$0xf]
    %v285 = vld [vmem:[#allocation7 + $0x34] sm:$0xf]
    %v286 = vld [vmem:[#allocation7 + $0x38] sm:$0xf]
    %v287 = vld [vmem:[#allocation7 + $0x3c] sm:$0xf]
    %v290 = vunpack.c.l.b16 %v270
    %v291 = vunpack.c.l.b16 %v271
    %vm292 = vcmask 1041409
    %v293 = vsel %vm292, %v291, %v290
    %v294 = vpack.c.b16 %v293, %v293
    %v312 = vunpack.c.l.b16 %v272
    %v313 = vunpack.c.l.b16 %v273
    %v314 = vunpack.c.l.b16 %v274
    %v315 = vunpack.c.l.b16 %v275
    %v316 = vunpack.c.l.b16 %v276
    %v317 = vunpack.c.l.b16 %v277
    %v318 = vunpack.c.l.b16 %v278
    %v319 = vunpack.c.l.b16 %v279
    %v320 = vunpack.c.l.b16 %v280
    %v321 = vunpack.c.l.b16 %v281
    %v322 = vunpack.c.l.b16 %v282
    %v323 = vunpack.c.l.b16 %v283
    %v324 = vunpack.c.l.b16 %v284
    %v325 = vunpack.c.l.b16 %v285
    %v326 = vunpack.c.l.b16 %v286
    %v327 = vunpack.c.l.b16 %v287
    %v328 = vpack.c.b16 %v313, %v312
    %v329 = vpack.c.b16 %v315, %v314
    %v330 = vpack.c.b16 %v317, %v316
    %v331 = vpack.c.b16 %v319, %v318
    %v332 = vpack.c.b16 %v321, %v320
    %v333 = vpack.c.b16 %v323, %v322
    %v334 = vpack.c.b16 %v325, %v324
    %v335 = vpack.c.b16 %v327, %v326
    %344 = vmatpush.bf16.msra.mxu0 %v335
    %345 = vmatpush.bf16.msra.mxu0 %v334
    %346 = vmatpush.bf16.msra.mxu0 %v333
    %347 = vmatpush.bf16.msra.mxu0 %v332
    %348 = vmatpush.bf16.msra.mxu0 %v331
    %349 = vmatpush.bf16.msra.mxu0 %v330
    %350 = vmatpush.bf16.msra.mxu0 %v329
    %351 = vmatpush.bf16.msra.mxu0 %v328
    %352 = vmatmul.bf16.gmra.mxu0 %v294
    %v353 = vpop.f32.mrf.mxu0
    %v354 = vadd.f32 0.0, %v353
    %v355 = vpop.f32.mrf.mxu0
    %356 = vdwg.mxu0
    %357 = vst [vmem:[#allocation8] sm:$0x3] %v354
    // Predicated region
    $region26: #{tpu_custom_call.1} parent=1 // pred_check
      _
    $region27: #{tpu_custom_call.1} parent=1 // pred_check_branch
      %359 = sbr.rel (0) target = $region29
    $region28: #{tpu_custom_call.1} parent=1 // pred_region
      %361 = vsyncadd [#allocation4], 0
      %s363 = sshll.u32 [#allocation8], 4
      %s364 = int_to_ptr.vmem [resolvable:$true] %s363
      %s365 = sshll.u32 %s3, 4
      %s366 = int_to_ptr.hbm [resolvable:$true] %s365
      %368 = dma.vmem_to_hbm [thread:$0]  %s364, 32, %s366, [#allocation4]
    $region29: #{tpu_custom_call.1} parent=1 // pred_fallthru
      _
    // Predicated region
    $region30: #{tpu_custom_call.1} parent=1 // pred_check
      _
    $region31: #{tpu_custom_call.1} parent=1 // pred_check_branch
      %370 = sbr.rel (0) target = $region33
    $region32: #{tpu_custom_call.1} parent=1 // pred_region
      %372 = dma.done [#allocation4], 32
    $region33: #{tpu_custom_call.1} parent=1 // pred_fallthru
      _
    %373 = vsyncpa [#allocation3], 1
    %374 = vsyncpa [#allocation6], 1
    %375 = vsyncpa [#allocation4], 1

</llo_original>
